<compile_context>
chip_gen: v6e
topology: v6e:2x2x1
jax: 0.10.0
libtpu: 0.0.40
codegen_flags: <defaults>
</compile_context>

<pallas_src>
import jax
import jax.numpy as jnp
from jax import lax
from jax.experimental import pallas as pl
from jax.experimental.pallas import tpu as pltpu

_INV_SQRT2 = 0.7071067811865476


def _gelu_exact_f32(x):
    # Matches torch.nn.GELU() default (erf formulation); x is float32.
    return 0.5 * x * (1.0 + lax.erf(x * _INV_SQRT2))


def _mlp_kernel(x_ref, w1_ref, b1_ref, w2_ref, b2_ref, o_ref):
    # x_ref : (TM, IN)      tile of input rows
    # w1_ref: (IN, HID)     fc1 weight (transposed vs. torch's (HID, IN))
    # b1_ref: (1, HID)      fc1 bias
    # w2_ref: (HID, OUT)    fc2 weight (transposed vs. torch's (OUT, HID))
    # b2_ref: (1, OUT)      fc2 bias
    # o_ref : (TM, OUT)     tile of output rows
    x = x_ref[...]  # native dtype (bf16 fast MXU path when inputs are bf16)

    h = jnp.dot(x, w1_ref[...], preferred_element_type=jnp.float32)
    h = h + b1_ref[...].astype(jnp.float32)
    h = _gelu_exact_f32(h)
    # Dropout with p=0.0 (module default) is the identity — nothing to do.

    # Cast the large (TM, HID) intermediate back to the fc2 weight dtype so the
    # second matmul also runs on the fast MXU path and the live value is small.
    h = h.astype(w2_ref.dtype)
    y = jnp.dot(h, w2_ref[...], preferred_element_type=jnp.float32)
    y = y + b2_ref[...].astype(jnp.float32)

    o_ref[...] = y.astype(o_ref.dtype)


def _round_up(x, m):
    return ((x + m - 1) // m) * m


def mlp_pallas(x, w1, b1, w2, b2, *, tile_m=256,
               vmem_limit_bytes=64 * 1024 * 1024):
    """x: (..., in_features) -> (..., out_features)."""
    in_features, hidden_features = w1.shape
    out_features = w2.shape[1]
    assert x.shape[-1] == in_features
    assert w2.shape[0] == hidden_features

    lead_shape = x.shape[:-1]
    rows = 1
    for d in lead_shape:
        rows *= d
    x2d = x.reshape(rows, in_features)

    # No jnp.pad: use a cdiv grid and let Pallas mask the ragged last block
    # (rows are independent, so garbage in the padded region never leaks).
    tile_m = max(8, min(tile_m, _round_up(rows, 8)))
    grid = (pl.cdiv(rows, tile_m),)

    b1_2d = b1.reshape(1, hidden_features)
    b2_2d = b2.reshape(1, out_features)

    act_bytes = jnp.dtype(x.dtype).itemsize
    w_bytes = jnp.dtype(w1.dtype).itemsize
    cost = pl.CostEstimate(
        flops=2 * rows * (in_features * hidden_features
                          + hidden_features * out_features),
        transcendentals=rows * hidden_features,  # erf in the GELU
        bytes_accessed=(rows * (in_features + out_features) * act_bytes
                        + (in_features * hidden_features
                           + hidden_features * out_features
                           + hidden_features + out_features) * w_bytes),
    )

    out = pl.pallas_call(
        _mlp_kernel,
        out_shape=jax.ShapeDtypeStruct((rows, out_features), x.dtype),
        grid_spec=pltpu.PrefetchScalarGridSpec(
            num_scalar_prefetch=0,
            grid=grid,
            in_specs=[
                pl.BlockSpec((tile_m, in_features), lambda i: (i, 0)),
                # Weights / biases: constant index_map -> DMA'd once, resident
                # in VMEM across all row tiles.
                pl.BlockSpec((in_features, hidden_features), lambda i: (0, 0)),
                pl.BlockSpec((1, hidden_features), lambda i: (0, 0)),
                pl.BlockSpec((hidden_features, out_features), lambda i: (0, 0)),
                pl.BlockSpec((1, out_features), lambda i: (0, 0)),
            ],
            out_specs=pl.BlockSpec((tile_m, out_features), lambda i: (i, 0)),
        ),
        compiler_params=pltpu.CompilerParams(
            dimension_semantics=("parallel",),
            vmem_limit_bytes=vmem_limit_bytes,
        ),
        cost_estimate=cost,
    )(x2d, w1, b1_2d, w2, b2_2d)

    return out.reshape(*lead_shape, out_features)


def init_mlp_params(key, in_features, hidden_features, out_features,
                    dtype=jnp.float32):
    """Synthetic init mirroring nn.Linear parameter shapes.

    Torch stores fc1.weight as (hidden, in); we keep the transposed (in, hidden)
    layout so the kernel does x @ W directly.
    """
    k1, k2, k3, k4 = jax.random.split(key, 4)
    lim1 = 1.0 / jnp.sqrt(in_features)
    lim2 = 1.0 / jnp.sqrt(hidden_features)
    w1 = jax.random.uniform(k1, (in_features, hidden_features),
                            minval=-lim1, maxval=lim1, dtype=jnp.float32)
    b1 = jax.random.uniform(k2, (hidden_features,),
                            minval=-lim1, maxval=lim1, dtype=jnp.float32)
    w2 = jax.random.uniform(k3, (hidden_features, out_features),
                            minval=-lim2, maxval=lim2, dtype=jnp.float32)
    b2 = jax.random.uniform(k4, (out_features,),
                            minval=-lim2, maxval=lim2, dtype=jnp.float32)
    return (w1.astype(dtype), b1.astype(dtype),
            w2.astype(dtype), b2.astype(dtype))


def mlp_reference(x, w1, b1, w2, b2):
    """f32 reference mirroring the kernel's dtype handling."""
    xf = x.astype(jnp.float32)
    h = jnp.dot(xf, w1.astype(jnp.float32)) + b1.astype(jnp.float32)
    h = _gelu_exact_f32(h)
    h = h.astype(w2.dtype).astype(jnp.float32)
    y = jnp.dot(h, w2.astype(jnp.float32)) + b2.astype(jnp.float32)
    return y.astype(x.dtype)


def _check(y, y_ref, atol, rtol):
    assert y.shape == y_ref.shape
    assert jnp.allclose(y.astype(jnp.float32), y_ref.astype(jnp.float32),
                        atol=atol, rtol=rtol)


if __name__ == "__main__":
    key = jax.random.PRNGKey(0)
    kx1, kp1, kx2, kp2, kx3, kp3 = jax.random.split(key, 6)

    # --- Test 1: f32, rows fit one tile exactly (B=2, N=64, C=32) -----------
    B, N = 2, 64
    cin, chid, cout = 32, 128, 32
    x = jax.random.normal(kx1, (B, N, cin), dtype=jnp.float32)
    w1, b1, w2, b2 = init_mlp_params(kp1, cin, chid, cout, dtype=jnp.float32)
    y = jax.block_until_ready(mlp_pallas(x, w1, b1, w2, b2))
    _check(y, mlp_reference(x, w1, b1, w2, b2), atol=1e-4, rtol=1e-4)

    # --- Test 2: bf16 fast MXU path, multi-step grid (B=2, N=256, C=64) -----
    B, N = 2, 256
    cin, chid, cout = 64, 256, 64
    x = jax.random.normal(kx2, (B, N, cin), dtype=jnp.float32).astype(jnp.bfloat16)
    w1, b1, w2, b2 = init_mlp_params(kp2, cin, chid, cout, dtype=jnp.bfloat16)
    y = jax.block_until_ready(mlp_pallas(x, w1, b1, w2, b2))
    _check(y, mlp_reference(x, w1, b1, w2, b2), atol=3e-2, rtol=3e-2)

    # --- Test 3: f32, ragged last row tile (B=2, N=150 -> 300 rows) ---------
    B, N = 2, 150
    cin, chid, cout = 32, 64, 48
    x = jax.random.normal(kx3, (B, N, cin), dtype=jnp.float32)
    w1, b1, w2, b2 = init_mlp_params(kp3, cin, chid, cout, dtype=jnp.float32)
    y = jax.block_until_ready(mlp_pallas(x, w1, b1, w2, b2))
    _check(y, mlp_reference(x, w1, b1, w2, b2), atol=1e-4, rtol=1e-4)

    print("KERNEL_OK")
</pallas_src>

<mosaic_0001>
module attributes {stable_mosaic.version = 11 : i64} {
  func.func @_mlp_kernel(%arg0: i32, %arg1: memref<128x32xf32, #tpu.memory_space<vmem>>, %arg2: memref<32x128xf32, #tpu.memory_space<vmem>>, %arg3: memref<1x128xf32, #tpu.memory_space<vmem>>, %arg4: memref<128x32xf32, #tpu.memory_space<vmem>>, %arg5: memref<1x32xf32, #tpu.memory_space<vmem>>, %arg6: memref<128x32xf32, #tpu.memory_space<vmem>>) attributes {dimension_semantics = [#tpu.dimension_semantics<parallel>], iteration_bounds = array<i64: 1>, scalar_prefetch = 0 : i64, scratch_operands = 0 : i64, tpu.core_type = #tpu.core_type<tc>, window_params = [{transform_indices = @transform_0, window_bounds = array<i64: 128, 32>}, {pipeline_mode = #tpu.pipeline_mode<synchronous>, transform_indices = @transform_1, window_bounds = array<i64: 32, 128>}, {pipeline_mode = #tpu.pipeline_mode<synchronous>, transform_indices = @transform_2, window_bounds = array<i64: 1, 128>}, {pipeline_mode = #tpu.pipeline_mode<synchronous>, transform_indices = @transform_3, window_bounds = array<i64: 128, 32>}, {pipeline_mode = #tpu.pipeline_mode<synchronous>, transform_indices = @transform_4, window_bounds = array<i64: 1, 32>}, {transform_indices = @transform_5, window_bounds = array<i64: 128, 32>}]} {
    %c0 = arith.constant 0 : index
    %c0_0 = arith.constant 0 : index
    %0 = vector.load %arg1[%c0, %c0_0] : memref<128x32xf32, #tpu.memory_space<vmem>>, vector<128x32xf32>
    %c0_1 = arith.constant 0 : index
    %c0_2 = arith.constant 0 : index
    %1 = vector.load %arg2[%c0_1, %c0_2] : memref<32x128xf32, #tpu.memory_space<vmem>>, vector<32x128xf32>
    %cst = arith.constant dense<0.000000e+00> : vector<128x128xf32>
    %2 = tpu.matmul %0, %1, %cst {dimension_numbers = #tpu.dot_dimension_numbers<[1], [0], [0], [1], [0, 0, 1, 1], [], []>} : vector<128x32xf32>, vector<32x128xf32>, vector<128x128xf32> -> vector<128x128xf32>
    %c0_3 = arith.constant 0 : index
    %c0_4 = arith.constant 0 : index
    %3 = vector.load %arg3[%c0_3, %c0_4] : memref<1x128xf32, #tpu.memory_space<vmem>>, vector<1x128xf32>
    %4 = vector.broadcast %3 : vector<1x128xf32> to vector<128x128xf32>
    %5 = arith.addf %2, %4 : vector<128x128xf32>
    %cst_5 = arith.constant 5.000000e-01 : f32
    %6 = vector.broadcast %cst_5 : f32 to vector<128x128xf32>
    %7 = arith.mulf %6, %5 : vector<128x128xf32>
    %cst_6 = arith.constant 0.707106769 : f32
    %8 = vector.broadcast %cst_6 : f32 to vector<128x128xf32>
    %9 = arith.mulf %5, %8 : vector<128x128xf32>
    %10 = math.erf %9 : vector<128x128xf32>
    %cst_7 = arith.constant 1.000000e+00 : f32
    %11 = vector.broadcast %cst_7 : f32 to vector<128x128xf32>
    %12 = arith.addf %11, %10 : vector<128x128xf32>
    %13 = arith.mulf %7, %12 : vector<128x128xf32>
    %c0_8 = arith.constant 0 : index
    %c0_9 = arith.constant 0 : index
    %14 = vector.load %arg4[%c0_8, %c0_9] : memref<128x32xf32, #tpu.memory_space<vmem>>, vector<128x32xf32>
    %cst_10 = arith.constant dense<0.000000e+00> : vector<128x32xf32>
    %15 = tpu.matmul %13, %14, %cst_10 {dimension_numbers = #tpu.dot_dimension_numbers<[1], [0], [0], [1], [0, 0, 1, 1], [], []>} : vector<128x128xf32>, vector<128x32xf32>, vector<128x32xf32> -> vector<128x32xf32>
    %c0_11 = arith.constant 0 : index
    %c0_12 = arith.constant 0 : index
    %16 = vector.load %arg5[%c0_11, %c0_12] : memref<1x32xf32, #tpu.memory_space<vmem>>, vector<1x32xf32>
    %17 = vector.broadcast %16 : vector<1x32xf32> to vector<128x32xf32>
    %18 = arith.addf %15, %17 : vector<128x32xf32>
    %c0_13 = arith.constant 0 : index
    %c0_14 = arith.constant 0 : index
    %19 = vector.load %arg6[%c0_13, %c0_14] : memref<128x32xf32, #tpu.memory_space<vmem>>, vector<128x32xf32>
    tpu.vector_store %arg6[%c0_13, %c0_14], %18 {strides = array<i32>} : memref<128x32xf32, #tpu.memory_space<vmem>>, vector<128x32xf32>,
    return
  }
  func.func @transform_0(%arg0: i32) -> (i32, i32) {
    %c0_i32 = arith.constant 0 : i32
    %c0_i32_0 = arith.constant 0 : i32
    return %arg0, %c0_i32 : i32, i32
  }
  func.func @transform_1(%arg0: i32) -> (i32, i32) {
    %c0_i32 = arith.constant 0 : i32
    %c0_i32_0 = arith.constant 0 : i32
    %c0_i32_1 = arith.constant 0 : i32
    return %c0_i32, %c0_i32_0 : i32, i32
  }
  func.func @transform_2(%arg0: i32) -> (i32, i32) {
    %c0_i32 = arith.constant 0 : i32
    %c0_i32_0 = arith.constant 0 : i32
    %c0_i32_1 = arith.constant 0 : i32
    return %c0_i32, %c0_i32_0 : i32, i32
  }
  func.func @transform_3(%arg0: i32) -> (i32, i32) {
    %c0_i32 = arith.constant 0 : i32
    %c0_i32_0 = arith.constant 0 : i32
    %c0_i32_1 = arith.constant 0 : i32
    return %c0_i32, %c0_i32_0 : i32, i32
  }
  func.func @transform_4(%arg0: i32) -> (i32, i32) {
    %c0_i32 = arith.constant 0 : i32
    %c0_i32_0 = arith.constant 0 : i32
    %c0_i32_1 = arith.constant 0 : i32
    return %c0_i32, %c0_i32_0 : i32, i32
  }
  func.func @transform_5(%arg0: i32) -> (i32, i32) {
    %c0_i32 = arith.constant 0 : i32
    %c0_i32_0 = arith.constant 0 : i32
    return %arg0, %c0_i32 : i32, i32
  }
}

</mosaic_0001>

<llo_original>
// kernel: tpu_custom_call.1
$region0: #{tpu_custom_call.1}
  #allocation0 [shape = 'u32[]', space=smem, size = 0x4, offset = 0x4, fixed_abs, tag = 'smem constant byte address 0x4 - core index']
  #allocation1 [shape = 'u32[144,128]{1,0:T(1,128)}', space=vmem, size = 0x12000, scoped, tag = 'internal scratch']
  %s0 = inlined_call_operand.vmem [shape: f32[128,32], index: 0, kind: input, shape index: {}]
  %s1 = inlined_call_operand.vmem [shape: f32[32,128], index: 1, kind: input, shape index: {}]
  %s2 = inlined_call_operand.vmem [shape: f32[1,128], index: 2, kind: input, shape index: {}]
  %s3 = inlined_call_operand.vmem [shape: f32[128,32], index: 3, kind: input, shape index: {}]
  %s4 = inlined_call_operand.vmem [shape: f32[1,32], index: 4, kind: input, shape index: {}]
  %s5 = inlined_call_operand.vmem [shape: f32[128,32], index: 5, kind: output, shape index: {}]
  %s6 = sld [smem:[#allocation0]]
  $region30: #{tpu_custom_call.1} parent=0
    _
  %s8 = ssub.s32 1, %s6
  %s9 = scalar_select 0, %s8, %s6
  // Predicated region
  $region2: #{tpu_custom_call.1} parent=0 // pred_check
    _
  $region3: #{tpu_custom_call.1} parent=0 // pred_check_branch
    %11 = sbr.rel (0) target = $region5
  $region4: #{tpu_custom_call.1} parent=0 // pred_region
    _
  $region5: #{tpu_custom_call.1} parent=0 // pred_fallthru
    _
  // Predicated region
  $region6: #{tpu_custom_call.1} parent=0 // pred_check
    _
  $region7: #{tpu_custom_call.1} parent=0 // pred_check_branch
    %13 = sbr.rel (0) target = $region9
  $region8: #{tpu_custom_call.1} parent=0 // pred_region
    _
  $region9: #{tpu_custom_call.1} parent=0 // pred_fallthru
    _
  // Predicated region
  $region10: #{tpu_custom_call.1} parent=0 // pred_check
    _
  $region11: #{tpu_custom_call.1} parent=0 // pred_check_branch
    %15 = sbr.rel (0) target = $region13
  $region12: #{tpu_custom_call.1} parent=0 // pred_region
    _
  $region13: #{tpu_custom_call.1} parent=0 // pred_fallthru
    _
  // Predicated region
  $region14: #{tpu_custom_call.1} parent=0 // pred_check
    _
  $region15: #{tpu_custom_call.1} parent=0 // pred_check_branch
    %17 = sbr.rel (0) target = $region17
  $region16: #{tpu_custom_call.1} parent=0 // pred_region
    _
  $region17: #{tpu_custom_call.1} parent=0 // pred_fallthru
    _
  // Predicated region
  $region18: #{tpu_custom_call.1} parent=0 // pred_check
    _
  $region19: #{tpu_custom_call.1} parent=0 // pred_check_branch
    %19 = sbr.rel (0) target = $region21
  $region20: #{tpu_custom_call.1} parent=0 // pred_region
    _
  $region21: #{tpu_custom_call.1} parent=0 // pred_fallthru
    _
  %v20 = vld [vmem:[%s0] sm:$0xff]
  %v21 = vld [vmem:[%s0 + $0x8] sm:$0xff]
  %v22 = vld [vmem:[%s0 + $0x10] sm:$0xff]
  %v23 = vld [vmem:[%s0 + $0x18] sm:$0xff]
  %v24 = vld [vmem:[%s0 + $0x20] sm:$0xff]
  %v25 = vld [vmem:[%s0 + $0x28] sm:$0xff]
  %v26 = vld [vmem:[%s0 + $0x30] sm:$0xff]
  %v27 = vld [vmem:[%s0 + $0x38] sm:$0xff]
  %v28 = vld [vmem:[%s0 + $0x40] sm:$0xff]
  %v29 = vld [vmem:[%s0 + $0x48] sm:$0xff]
  %v30 = vld [vmem:[%s0 + $0x50] sm:$0xff]
  %v31 = vld [vmem:[%s0 + $0x58] sm:$0xff]
  %v32 = vld [vmem:[%s0 + $0x60] sm:$0xff]
  %v33 = vld [vmem:[%s0 + $0x68] sm:$0xff]
  %v34 = vld [vmem:[%s0 + $0x70] sm:$0xff]
  %v35 = vld [vmem:[%s0 + $0x78] sm:$0xff]
  %v36 = vld [vmem:[%s1] sm:$0xff]
  %v37 = vld [vmem:[%s1 + $0x8] sm:$0xff]
  %v38 = vld [vmem:[%s1 + $0x10] sm:$0xff]
  %v39 = vld [vmem:[%s1 + $0x18] sm:$0xff]
  %v40 = vld [vmem:[%s2] sm:$0x1]
  %v42 = vlaneseq
  %v43 = vshrl.u32 %v42, 7
  %v44 = vsub.s32 0, %v43
  %v45 = vrot.slane %v40, %v44
  %vm47 = vcmask 261120
  %v49 = vsel %vm47, %v20, 0
  %v52 = vsel %vm47, %v21, 0
  %v55 = vsel %vm47, %v22, 0
  %v58 = vsel %vm47, %v23, 0
  %v61 = vsel %vm47, %v24, 0
  %v64 = vsel %vm47, %v25, 0
  %v67 = vsel %vm47, %v26, 0
  %v70 = vsel %vm47, %v27, 0
  %v73 = vsel %vm47, %v28, 0
  %v76 = vsel %vm47, %v29, 0
  %v79 = vsel %vm47, %v30, 0
  %v82 = vsel %vm47, %v31, 0
  %v85 = vsel %vm47, %v32, 0
  %v88 = vsel %vm47, %v33, 0
  %v91 = vsel %vm47, %v34, 0
  %v94 = vsel %vm47, %v35, 0
  %96 = vmatprep.subr.mxu0 0.0
  %97 = vmatpush1.msra.mxu0 0.0
  %98 = vmatprep.subr.mxu0 0.0
  %99 = vmatpush1.msra.mxu0 0.0
  %100 = vmatprep.subr.mxu0 0.0
  %101 = vmatpush1.msra.mxu0 0.0
  %102 = vmatprep.subr.mxu0 0.0
  %103 = vmatpush1.msra.mxu0 0.0
  %104 = vmatprep.subr.mxu0 0.0
  %105 = vmatpush1.msra.mxu0 0.0
  %106 = vmatprep.subr.mxu0 0.0
  %107 = vmatpush1.msra.mxu0 0.0
  %108 = vmatprep.subr.mxu0 0.0
  %109 = vmatpush1.msra.mxu0 0.0
  %110 = vmatprep.subr.mxu0 0.0
  %111 = vmatpush1.msra.mxu0 0.0
  %112 = vmatprep.subr.mxu0 0.0
  %113 = vmatpush1.msra.mxu0 0.0
  %114 = vmatprep.subr.mxu0 0.0
  %115 = vmatpush1.msra.mxu0 0.0
  %116 = vmatprep.subr.mxu0 0.0
  %117 = vmatpush1.msra.mxu0 0.0
  %118 = vmatprep.subr.mxu0 0.0
  %119 = vmatpush1.msra.mxu0 0.0
  %120 = vmatprep.subr.mxu0 0.0
  %121 = vmatpush1.msra.mxu0 %v39
  %122 = vmatprep.subr.mxu0 0.0
  %123 = vmatpush1.msra.mxu0 %v38
  %124 = vmatprep.subr.mxu0 0.0
  %125 = vmatpush1.msra.mxu0 %v37
  %126 = vmatprep.subr.mxu0 0.0
  %127 = vmatpush1.msra.mxu0 %v36
  %128 = vmatprep.subr.mxu0 0.0
  %129 = vmatpush2.msra.mxu0 0.0
  %130 = vmatprep.subr.mxu0 0.0
  %131 = vmatpush2.msra.mxu0 0.0
  %132 = vmatprep.subr.mxu0 0.0
  %133 = vmatpush2.msra.mxu0 0.0
  %134 = vmatprep.subr.mxu0 0.0
  %135 = vmatpush2.msra.mxu0 0.0
  %136 = vmatprep.subr.mxu0 0.0
  %137 = vmatpush2.msra.mxu0 0.0
  %138 = vmatprep.subr.mxu0 0.0
  %139 = vmatpush2.msra.mxu0 0.0
  %140 = vmatprep.subr.mxu0 0.0
  %141 = vmatpush2.msra.mxu0 0.0
  %142 = vmatprep.subr.mxu0 0.0
  %143 = vmatpush2.msra.mxu0 0.0
  %144 = vmatprep.subr.mxu0 0.0
  %145 = vmatpush2.msra.mxu0 0.0
  %146 = vmatprep.subr.mxu0 0.0
  %147 = vmatpush2.msra.mxu0 0.0
  %148 = vmatprep.subr.mxu0 0.0
  %149 = vmatpush2.msra.mxu0 0.0
  %150 = vmatprep.subr.mxu0 0.0
  %151 = vmatpush2.msra.mxu0 0.0
  %152 = vmatprep.subr.mxu0 0.0
  %153 = vmatpush2.msra.mxu0 0.0
  %154 = vmatprep.subr.mxu0 0.0
  %155 = vmatpush2.msra.mxu0 0.0
  %156 = vmatprep.subr.mxu0 0.0
  %157 = vmatpush2.msra.mxu0 0.0
  %158 = vmatprep.subr.mxu0 0.0
  %159 = vmatpush2.msra.mxu0 0.0
  %160 = vmatprep.mubr.f32.mxu0 0.0
  %161 = vmatmul.mubr.f32.gmra.mxu0 %v49
  %v162 = vpop.f32.mrf.mxu0
  %v163 = vadd.f32 %v45, %v162
  %v164 = vpop.f32.mrf.mxu0
  %165 = vmatprep.mubr.f32.mxu0 0.0
  %166 = vmatmul.mubr.f32.gmra.mxu0 %v52
  %v167 = vpop.f32.mrf.mxu0
  %v168 = vadd.f32 %v45, %v167
  %v169 = vpop.f32.mrf.mxu0
  %170 = vmatprep.mubr.f32.mxu0 0.0
  %171 = vmatmul.mubr.f32.gmra.mxu0 %v55
  %v172 = vpop.f32.mrf.mxu0
  %v173 = vadd.f32 %v45, %v172
  %v174 = vpop.f32.mrf.mxu0
  %175 = vmatprep.mubr.f32.mxu0 0.0
  %176 = vmatmul.mubr.f32.gmra.mxu0 %v58
  %v177 = vpop.f32.mrf.mxu0
  %v178 = vadd.f32 %v45, %v177
  %v179 = vpop.f32.mrf.mxu0
  %180 = vmatprep.mubr.f32.mxu0 0.0
  %181 = vmatmul.mubr.f32.gmra.mxu0 %v61
  %v182 = vpop.f32.mrf.mxu0
  %v183 = vadd.f32 %v45, %v182
  %v184 = vpop.f32.mrf.mxu0
  %185 = vmatprep.mubr.f32.mxu0 0.0
  %186 = vmatmul.mubr.f32.gmra.mxu0 %v64
  %v187 = vpop.f32.mrf.mxu0
  %v188 = vadd.f32 %v45, %v187
  %v189 = vpop.f32.mrf.mxu0
  %190 = vmatprep.mubr.f32.mxu0 0.0
  %191 = vmatmul.mubr.f32.gmra.mxu0 %v67
  %v192 = vpop.f32.mrf.mxu0
  %v193 = vadd.f32 %v45, %v192
  %v194 = vpop.f32.mrf.mxu0
  %195 = vmatprep.mubr.f32.mxu0 0.0
  %196 = vmatmul.mubr.f32.gmra.mxu0 %v70
  %v197 = vpop.f32.mrf.mxu0
  %v198 = vadd.f32 %v45, %v197
  %v199 = vpop.f32.mrf.mxu0
  %200 = vmatprep.mubr.f32.mxu0 0.0
  %201 = vmatmul.mubr.f32.gmra.mxu0 %v73
  %v202 = vpop.f32.mrf.mxu0
  %v203 = vadd.f32 %v45, %v202
  %v204 = vpop.f32.mrf.mxu0
  %205 = vmatprep.mubr.f32.mxu0 0.0
  %206 = vmatmul.mubr.f32.gmra.mxu0 %v76
  %v207 = vpop.f32.mrf.mxu0
  %v208 = vadd.f32 %v45, %v207
  %v209 = vpop.f32.mrf.mxu0
  %210 = vmatprep.mubr.f32.mxu0 0.0
  %211 = vmatmul.mubr.f32.gmra.mxu0 %v79
  %v212 = vpop.f32.mrf.mxu0
  %v213 = vadd.f32 %v45, %v212
  %v214 = vpop.f32.mrf.mxu0
  %215 = vmatprep.mubr.f32.mxu0 0.0
  %216 = vmatmul.mubr.f32.gmra.mxu0 %v82
  %v217 = vpop.f32.mrf.mxu0
  %v218 = vadd.f32 %v45, %v217
  %v219 = vpop.f32.mrf.mxu0
  %220 = vmatprep.mubr.f32.mxu0 0.0
  %221 = vmatmul.mubr.f32.gmra.mxu0 %v85
  %v222 = vpop.f32.mrf.mxu0
  %v223 = vadd.f32 %v45, %v222
  %v224 = vpop.f32.mrf.mxu0
  %225 = vmatprep.mubr.f32.mxu0 0.0
  %226 = vmatmul.mubr.f32.gmra.mxu0 %v88
  %v227 = vpop.f32.mrf.mxu0
  %v228 = vadd.f32 %v45, %v227
  %v229 = vpop.f32.mrf.mxu0
  %230 = vmatprep.mubr.f32.mxu0 0.0
  %231 = vmatmul.mubr.f32.gmra.mxu0 %v91
  %v232 = vpop.f32.mrf.mxu0
  %v233 = vadd.f32 %v45, %v232
  %v234 = vpop.f32.mrf.mxu0
  %235 = vmatprep.mubr.f32.mxu0 0.0
  %236 = vmatmul.mubr.f32.gmra.mxu0 %v94
  %v237 = vpop.f32.mrf.mxu0
  %v238 = vadd.f32 %v45, %v237
  %v239 = vpop.f32.mrf.mxu0
  %240 = vdwg.mxu0
  %v241 = vmul.f32 %v163, 0.5
  %v242 = vmul.f32 %v168, 0.5
  %v243 = vmul.f32 %v173, 0.5
  %v244 = vmul.f32 %v178, 0.5
  %v245 = vmul.f32 %v183, 0.5
  %v246 = vmul.f32 %v188, 0.5
  %v247 = vmul.f32 %v193, 0.5
  %v248 = vmul.f32 %v198, 0.5
  %v249 = vmul.f32 %v203, 0.5
  %v250 = vmul.f32 %v208, 0.5
  %v251 = vmul.f32 %v213, 0.5
  %v252 = vmul.f32 %v218, 0.5
  %v253 = vmul.f32 %v223, 0.5
  %v254 = vmul.f32 %v228, 0.5
  %v255 = vmul.f32 %v233, 0.5
  %v256 = vmul.f32 %v238, 0.5
  %v257 = vmul.f32 %v163, 0.70710677
  %v258 = vmul.f32 %v168, 0.70710677
  %v259 = vmul.f32 %v173, 0.70710677
  %v260 = vmul.f32 %v178, 0.70710677
  %v261 = vmul.f32 %v183, 0.70710677
  %v262 = vmul.f32 %v188, 0.70710677
  %v263 = vmul.f32 %v193, 0.70710677
  %v264 = vmul.f32 %v198, 0.70710677
  %v265 = vmul.f32 %v203, 0.70710677
  %v266 = vmul.f32 %v208, 0.70710677
  %v267 = vmul.f32 %v213, 0.70710677
  %v268 = vmul.f32 %v218, 0.70710677
  %v269 = vmul.f32 %v223, 0.70710677
  %v270 = vmul.f32 %v228, 0.70710677
  %v271 = vmul.f32 %v233, 0.70710677
  %v272 = vmul.f32 %v238, 0.70710677
  %v273 = verf.f32.pop %v257
  %v274 = verf.f32.pop %v258
  %v275 = verf.f32.pop %v259
  %v276 = verf.f32.pop %v260
  %v277 = verf.f32.pop %v261
  %v278 = verf.f32.pop %v262
  %v279 = verf.f32.pop %v263
  %v280 = verf.f32.pop %v264
  %v281 = verf.f32.pop %v265
  %v282 = verf.f32.pop %v266
  %v283 = verf.f32.pop %v267
  %v284 = verf.f32.pop %v268
  %v285 = verf.f32.pop %v269
  %v286 = verf.f32.pop %v270
  %v287 = verf.f32.pop %v271
  %v288 = verf.f32.pop %v272
  %v289 = vadd.f32 %v273, 1.0
  %v290 = vadd.f32 %v274, 1.0
  %v291 = vadd.f32 %v275, 1.0
  %v292 = vadd.f32 %v276, 1.0
  %v293 = vadd.f32 %v277, 1.0
  %v294 = vadd.f32 %v278, 1.0
  %v295 = vadd.f32 %v279, 1.0
  %v296 = vadd.f32 %v280, 1.0
  %v297 = vadd.f32 %v281, 1.0
  %v298 = vadd.f32 %v282, 1.0
  %v299 = vadd.f32 %v283, 1.0
  %v300 = vadd.f32 %v284, 1.0
  %v301 = vadd.f32 %v285, 1.0
  %v302 = vadd.f32 %v286, 1.0
  %v303 = vadd.f32 %v287, 1.0
  %v304 = vadd.f32 %v288, 1.0
  %v305 = vmul.f32 %v241, %v289
  %v306 = vmul.f32 %v242, %v290
  %v307 = vmul.f32 %v243, %v291
  %v308 = vmul.f32 %v244, %v292
  %v309 = vmul.f32 %v245, %v293
  %v310 = vmul.f32 %v246, %v294
  %v311 = vmul.f32 %v247, %v295
  %v312 = vmul.f32 %v248, %v296
  %v313 = vmul.f32 %v249, %v297
  %v314 = vmul.f32 %v250, %v298
  %v315 = vmul.f32 %v251, %v299
  %v316 = vmul.f32 %v252, %v300
  %v317 = vmul.f32 %v253, %v301
  %v318 = vmul.f32 %v254, %v302
  %v319 = vmul.f32 %v255, %v303
  %v320 = vmul.f32 %v256, %v304
  %v321 = vld [vmem:[%s3] sm:$0xff]
  %v322 = vld [vmem:[%s3 + $0x8] sm:$0xff]
  %v323 = vld [vmem:[%s3 + $0x10] sm:$0xff]
  %v324 = vld [vmem:[%s3 + $0x18] sm:$0xff]
  %v325 = vld [vmem:[%s3 + $0x20] sm:$0xff]
  %v326 = vld [vmem:[%s3 + $0x28] sm:$0xff]
  %v327 = vld [vmem:[%s3 + $0x30] sm:$0xff]
  %v328 = vld [vmem:[%s3 + $0x38] sm:$0xff]
  %v329 = vld [vmem:[%s3 + $0x40] sm:$0xff]
  %v330 = vld [vmem:[%s3 + $0x48] sm:$0xff]
  %v331 = vld [vmem:[%s3 + $0x50] sm:$0xff]
  %v332 = vld [vmem:[%s3 + $0x58] sm:$0xff]
  %v333 = vld [vmem:[%s3 + $0x60] sm:$0xff]
  %v334 = vld [vmem:[%s3 + $0x68] sm:$0xff]
  %v335 = vld [vmem:[%s3 + $0x70] sm:$0xff]
  %v336 = vld [vmem:[%s3 + $0x78] sm:$0xff]
  %v337 = vld [vmem:[%s4] sm:$0x1]
  %v339 = vlaneseq
  %v340 = vshrl.u32 %v339, 7
  %v341 = vsub.s32 0, %v340
  %v342 = vrot.slane %v337, %v341
  %344 = vmatprep.subr.mxu0 0.0
  %345 = vmatpush1.msra.mxu0 %v336
  %346 = vmatprep.subr.mxu0 0.0
  %347 = vmatpush1.msra.mxu0 %v335
  %348 = vmatprep.subr.mxu0 0.0
  %349 = vmatpush1.msra.mxu0 %v334
  %350 = vmatprep.subr.mxu0 0.0
  %351 = vmatpush1.msra.mxu0 %v333
  %352 = vmatprep.subr.mxu0 0.0
  %353 = vmatpush1.msra.mxu0 %v332
  %354 = vmatprep.subr.mxu0 0.0
  %355 = vmatpush1.msra.mxu0 %v331
  %356 = vmatprep.subr.mxu0 0.0
  %357 = vmatpush1.msra.mxu0 %v330
  %358 = vmatprep.subr.mxu0 0.0
  %359 = vmatpush1.msra.mxu0 %v329
  %360 = vmatprep.subr.mxu0 0.0
  %361 = vmatpush1.msra.mxu0 %v328
  %362 = vmatprep.subr.mxu0 0.0
  %363 = vmatpush1.msra.mxu0 %v327
  %364 = vmatprep.subr.mxu0 0.0
  %365 = vmatpush1.msra.mxu0 %v326
  %366 = vmatprep.subr.mxu0 0.0
  %367 = vmatpush1.msra.mxu0 %v325
  %368 = vmatprep.subr.mxu0 0.0
  %369 = vmatpush1.msra.mxu0 %v324
  %370 = vmatprep.subr.mxu0 0.0
  %371 = vmatpush1.msra.mxu0 %v323
  %372 = vmatprep.subr.mxu0 0.0
  %373 = vmatpush1.msra.mxu0 %v322
  %374 = vmatprep.subr.mxu0 0.0
  %375 = vmatpush1.msra.mxu0 %v321
  %376 = vmatprep.subr.mxu0 0.0
  %377 = vmatpush2.msra.mxu0 0.0
  %378 = vmatprep.subr.mxu0 0.0
  %379 = vmatpush2.msra.mxu0 0.0
  %380 = vmatprep.subr.mxu0 0.0
  %381 = vmatpush2.msra.mxu0 0.0
  %382 = vmatprep.subr.mxu0 0.0
  %383 = vmatpush2.msra.mxu0 0.0
  %384 = vmatprep.subr.mxu0 0.0
  %385 = vmatpush2.msra.mxu0 0.0
  %386 = vmatprep.subr.mxu0 0.0
  %387 = vmatpush2.msra.mxu0 0.0
  %388 = vmatprep.subr.mxu0 0.0
  %389 = vmatpush2.msra.mxu0 0.0
  %390 = vmatprep.subr.mxu0 0.0
  %391 = vmatpush2.msra.mxu0 0.0
  %392 = vmatprep.subr.mxu0 0.0
  %393 = vmatpush2.msra.mxu0 0.0
  %394 = vmatprep.subr.mxu0 0.0
  %395 = vmatpush2.msra.mxu0 0.0
  %396 = vmatprep.subr.mxu0 0.0
  %397 = vmatpush2.msra.mxu0 0.0
  %398 = vmatprep.subr.mxu0 0.0
  %399 = vmatpush2.msra.mxu0 0.0
  %400 = vmatprep.subr.mxu0 0.0
  %401 = vmatpush2.msra.mxu0 0.0
  %402 = vmatprep.subr.mxu0 0.0
  %403 = vmatpush2.msra.mxu0 0.0
  %404 = vmatprep.subr.mxu0 0.0
  %405 = vmatpush2.msra.mxu0 0.0
  %406 = vmatprep.subr.mxu0 0.0
  %407 = vmatpush2.msra.mxu0 0.0
  %408 = vmatprep.mubr.f32.mxu0 0.0
  %409 = vmatmul.mubr.f32.gmra.mxu0 %v305
  %v410 = vpop.f32.mrf.mxu0
  %v411 = vadd.f32 %v342, %v410
  %v412 = vpop.f32.mrf.mxu0
  %413 = vmatprep.mubr.f32.mxu0 0.0
  %414 = vmatmul.mubr.f32.gmra.mxu0 %v306
  %v415 = vpop.f32.mrf.mxu0
  %v416 = vadd.f32 %v342, %v415
  %v417 = vpop.f32.mrf.mxu0
  %418 = vmatprep.mubr.f32.mxu0 0.0
  %419 = vmatmul.mubr.f32.gmra.mxu0 %v307
  %v420 = vpop.f32.mrf.mxu0
  %v421 = vadd.f32 %v342, %v420
  %v422 = vpop.f32.mrf.mxu0
  %423 = vmatprep.mubr.f32.mxu0 0.0
  %424 = vmatmul.mubr.f32.gmra.mxu0 %v308
  %v425 = vpop.f32.mrf.mxu0
  %v426 = vadd.f32 %v342, %v425
  %v427 = vpop.f32.mrf.mxu0
  %428 = vmatprep.mubr.f32.mxu0 0.0
  %429 = vmatmul.mubr.f32.gmra.mxu0 %v309
  %v430 = vpop.f32.mrf.mxu0
  %v431 = vadd.f32 %v342, %v430
  %v432 = vpop.f32.mrf.mxu0
  %433 = vmatprep.mubr.f32.mxu0 0.0
  %434 = vmatmul.mubr.f32.gmra.mxu0 %v310
  %v435 = vpop.f32.mrf.mxu0
  %v436 = vadd.f32 %v342, %v435
  %v437 = vpop.f32.mrf.mxu0
  %438 = vmatprep.mubr.f32.mxu0 0.0
  %439 = vmatmul.mubr.f32.gmra.mxu0 %v311
  %v440 = vpop.f32.mrf.mxu0
  %v441 = vadd.f32 %v342, %v440
  %v442 = vpop.f32.mrf.mxu0
  %443 = vmatprep.mubr.f32.mxu0 0.0
  %444 = vmatmul.mubr.f32.gmra.mxu0 %v312
  %v445 = vpop.f32.mrf.mxu0
  %v446 = vadd.f32 %v342, %v445
  %v447 = vpop.f32.mrf.mxu0
  %448 = vmatprep.mubr.f32.mxu0 0.0
  %449 = vmatmul.mubr.f32.gmra.mxu0 %v313
  %v450 = vpop.f32.mrf.mxu0
  %v451 = vadd.f32 %v342, %v450
  %v452 = vpop.f32.mrf.mxu0
  %453 = vmatprep.mubr.f32.mxu0 0.0
  %454 = vmatmul.mubr.f32.gmra.mxu0 %v314
  %v455 = vpop.f32.mrf.mxu0
  %v456 = vadd.f32 %v342, %v455
  %v457 = vpop.f32.mrf.mxu0
  %458 = vmatprep.mubr.f32.mxu0 0.0
  %459 = vmatmul.mubr.f32.gmra.mxu0 %v315
  %v460 = vpop.f32.mrf.mxu0
  %v461 = vadd.f32 %v342, %v460
  %v462 = vpop.f32.mrf.mxu0
  %463 = vmatprep.mubr.f32.mxu0 0.0
  %464 = vmatmul.mubr.f32.gmra.mxu0 %v316
  %v465 = vpop.f32.mrf.mxu0
  %v466 = vadd.f32 %v342, %v465
  %v467 = vpop.f32.mrf.mxu0
  %468 = vmatprep.mubr.f32.mxu0 0.0
  %469 = vmatmul.mubr.f32.gmra.mxu0 %v317
  %v470 = vpop.f32.mrf.mxu0
  %v471 = vadd.f32 %v342, %v470
  %v472 = vpop.f32.mrf.mxu0
  %473 = vmatprep.mubr.f32.mxu0 0.0
  %474 = vmatmul.mubr.f32.gmra.mxu0 %v318
  %v475 = vpop.f32.mrf.mxu0
  %v476 = vadd.f32 %v342, %v475
  %v477 = vpop.f32.mrf.mxu0
  %478 = vmatprep.mubr.f32.mxu0 0.0
  %479 = vmatmul.mubr.f32.gmra.mxu0 %v319
  %v480 = vpop.f32.mrf.mxu0
  %v481 = vadd.f32 %v342, %v480
  %v482 = vpop.f32.mrf.mxu0
  %483 = vmatprep.mubr.f32.mxu0 0.0
  %484 = vmatmul.mubr.f32.gmra.mxu0 %v320
  %v485 = vpop.f32.mrf.mxu0
  %v486 = vadd.f32 %v342, %v485
  %v487 = vpop.f32.mrf.mxu0
  %488 = vdwg.mxu0
  %489 = vst.msk [vmem:[%s5] sm:$0xff] %vm47, %v411
  %490 = vst.msk [vmem:[%s5 + $0x8] sm:$0xff] %vm47, %v416
  %491 = vst.msk [vmem:[%s5 + $0x10] sm:$0xff] %vm47, %v421
  %492 = vst.msk [vmem:[%s5 + $0x18] sm:$0xff] %vm47, %v426
  %493 = vst.msk [vmem:[%s5 + $0x20] sm:$0xff] %vm47, %v431
  %494 = vst.msk [vmem:[%s5 + $0x28] sm:$0xff] %vm47, %v436
  %495 = vst.msk [vmem:[%s5 + $0x30] sm:$0xff] %vm47, %v441
  %496 = vst.msk [vmem:[%s5 + $0x38] sm:$0xff] %vm47, %v446
  %497 = vst.msk [vmem:[%s5 + $0x40] sm:$0xff] %vm47, %v451
  %498 = vst.msk [vmem:[%s5 + $0x48] sm:$0xff] %vm47, %v456
  %499 = vst.msk [vmem:[%s5 + $0x50] sm:$0xff] %vm47, %v461
  %500 = vst.msk [vmem:[%s5 + $0x58] sm:$0xff] %vm47, %v466
  %501 = vst.msk [vmem:[%s5 + $0x60] sm:$0xff] %vm47, %v471
  %502 = vst.msk [vmem:[%s5 + $0x68] sm:$0xff] %vm47, %v476
  %503 = vst.msk [vmem:[%s5 + $0x70] sm:$0xff] %vm47, %v481
  %504 = vst.msk [vmem:[%s5 + $0x78] sm:$0xff] %vm47, %v486
  // Predicated region
  $region22: #{tpu_custom_call.1} parent=0 // pred_check
    _
  $region23: #{tpu_custom_call.1} parent=0 // pred_check_branch
    %506 = sbr.rel (0) target = $region25
  $region24: #{tpu_custom_call.1} parent=0 // pred_region
    _
  $region25: #{tpu_custom_call.1} parent=0 // pred_fallthru
    _
  // Predicated region
  $region26: #{tpu_custom_call.1} parent=0 // pred_check
    _
  $region27: #{tpu_custom_call.1} parent=0 // pred_check_branch
    %508 = sbr.rel (0) target = $region29
  $region28: #{tpu_custom_call.1} parent=0 // pred_region
    _
  $region29: #{tpu_custom_call.1} parent=0 // pred_fallthru
    _

</llo_original>
